<compile_context>
chip_gen: v6e
topology: v6e:2x2x1
jax: 0.10.0
libtpu: 0.0.40
codegen_flags: <defaults>
</compile_context>

<pallas_src>
import functools

import jax
import jax.numpy as jnp
from jax.experimental import pallas as pl
from jax.experimental.pallas import tpu as pltpu


def _round_up(x, m):
    return (x + m - 1) // m * m


def output_module_kernel(x_ref, state_ref, hw_ref, rw_ref, y_ref):
    # x_ref:     [B, E]        query (f32)
    # state_ref: [B, K, E]     memory blocks (f32)
    # hw_ref:    [E, E]        H.weight, [out, in] layout (bf16)
    # rw_ref:    [TILE_V, E]   tile of R.weight, [out, in] layout (bf16)
    # y_ref:     [B, TILE_V]   logits tile (f32)
    q = x_ref[...].astype(jnp.float32)                       # [B, E]
    state = state_ref[...].astype(jnp.float32)                # [B, K, E]
    x3 = q[:, None, :]                                        # [B, 1, E]

    # Attention scores s[b,1,k] = sum_e x[b,e] * state[b,k,e]  (MXU, batched).
    s = jnp.einsum("bqe,bke->bqk", x3, state,
                   preferred_element_type=jnp.float32)        # [B, 1, K]
    s = s - jnp.max(s, axis=-1, keepdims=True)
    e = jnp.exp(s)
    # Softmax denominator via EUP approx reciprocal (free slot).
    p = e * pl.reciprocal(jnp.sum(e, axis=-1, keepdims=True), approx=True)

    # Readout u[b,e] = sum_k p[b,k] * state[b,k,e]             (MXU, batched).
    u3 = jnp.einsum("bqk,bke->bqe", p, state,
                    preferred_element_type=jnp.float32)       # [B, 1, E]
    u = jnp.sum(u3, axis=1)                                   # [B, E] (q == 1)

    # H(u): contract against H.weight's `in` axis (axis 1) -> u @ H^T.
    hu = jax.lax.dot_general(
        u.astype(jnp.bfloat16), hw_ref[...].astype(jnp.bfloat16),
        dimension_numbers=(((1,), (1,)), ((), ())),
        preferred_element_type=jnp.float32)                   # [B, E]

    # activation(q + H(u)); activation = ReLU.
    z = jnp.maximum(q + hu, 0.0).astype(jnp.bfloat16)         # [B, E]

    # R(z) for this vocab tile: z @ R_tile^T.
    y = jax.lax.dot_general(
        z, rw_ref[...].astype(jnp.bfloat16),
        dimension_numbers=(((1,), (1,)), ((), ())),
        preferred_element_type=jnp.float32)                   # [B, TILE_V]
    y_ref[...] = y.astype(y_ref.dtype)


def output_module_forward(x, state, H_weight, R_weight, *,
                          num_blocks, embed_size, tile_v=512):
    """x: [B, 1, E]; state: [B, num_blocks*E]; H_weight: [E, E]; R_weight: [V, E]."""
    B = x.shape[0]
    E = embed_size
    K = num_blocks
    V = R_weight.shape[0]

    # Weights stay in PyTorch [out, in] layout (no HBM transpose per call).
    # In production, store them pre-cast to bf16 outside the step so this
    # cast is free too.
    hw = H_weight.astype(jnp.bfloat16)                   # [E, E]
    rw = R_weight.astype(jnp.bfloat16)                   # [V, E]

    # Lane-dense output: pad V to a multiple of 128 (and of the V tile) so
    # stores are unmasked `vst`; padding is sliced off below.
    tile_v = min(tile_v, _round_up(V, 128))
    v_pad = _round_up(V, tile_v)
    if v_pad != V:
        rw = jnp.pad(rw, ((0, v_pad - V), (0, 0)))
    grid_v = v_pad // tile_v

    xq = x.reshape(B, E)                                 # squeeze(1)
    state3 = state.reshape(B, K, E)                      # split(dim=1)+stack == reshape

    # TODO(synk): at tiny (B, K, E) this head is launch/step-overhead bound;
    # in a real model fuse it with the preceding memory-cell update or batch
    # many timesteps into one pallas_call.
    y_pad = pl.pallas_call(
        output_module_kernel,
        out_shape=jax.ShapeDtypeStruct((B, v_pad), jnp.float32),
        grid=(grid_v,),
        in_specs=[
            pl.BlockSpec((B, E), lambda j: (0, 0)),          # x (same every V tile)
            pl.BlockSpec((B, K, E), lambda j: (0, 0, 0)),    # state
            pl.BlockSpec((E, E), lambda j: (0, 0)),          # H.weight
            pl.BlockSpec((tile_v, E), lambda j: (j, 0)),     # R.weight tile
        ],
        out_specs=pl.BlockSpec((B, tile_v), lambda j: (0, j)),
        compiler_params=pltpu.CompilerParams(
            dimension_semantics=("parallel",),               # 2 TCs on v7x
        ),
    )(xq, state3, hw, rw)

    return y_pad[:, :V]


def _reference(x, state, H_weight, R_weight, *, num_blocks, embed_size):
    B = x.shape[0]
    E, K = embed_size, num_blocks
    state3 = state.reshape(B, K, E)
    att = jnp.sum(state3 * x.reshape(B, 1, E), axis=2)
    att = att - jnp.max(att, axis=-1, keepdims=True)
    att = jax.nn.softmax(att, axis=-1)[:, :, None]
    u = jnp.sum(state3 * att, axis=1)
    q = x.reshape(B, E)
    z = jnp.maximum(q + u @ H_weight.T, 0.0)
    return z @ R_weight.T


if __name__ == "__main__":
    # Small, module-consistent shapes (vocab chosen non-multiple-of-128 to
    # exercise the lane-dense padding + V-tiled grid).
    B = 2
    num_blocks = 4
    embed_size = 32
    vocab_size = 1000

    key = jax.random.PRNGKey(0)
    k_x, k_s, k_h, k_r = jax.random.split(key, 4)

    x = jax.random.normal(k_x, (B, 1, embed_size), dtype=jnp.float32)
    state = jax.random.normal(k_s, (B, num_blocks * embed_size), dtype=jnp.float32)
    # nn.Linear weights initialized normal(0.0, 0.1), shape [out, in].
    H_weight = 0.1 * jax.random.normal(k_h, (embed_size, embed_size), dtype=jnp.float32)
    R_weight = 0.1 * jax.random.normal(k_r, (vocab_size, embed_size), dtype=jnp.float32)

    fwd = jax.jit(functools.partial(
        output_module_forward,
        num_blocks=num_blocks, embed_size=embed_size, tile_v=256))

    y = fwd(x, state, H_weight, R_weight)
    y = jax.block_until_ready(y)

    y_ref = _reference(
        x, state, H_weight, R_weight,
        num_blocks=num_blocks, embed_size=embed_size)

    assert y.shape == (B, vocab_size)
    # bf16 weights/activations + approx softmax reciprocal -> looser tolerance.
    assert jnp.allclose(y, y_ref, atol=5e-2, rtol=5e-2)

    print("KERNEL_OK")
</pallas_src>

<mosaic_0001>
module attributes {stable_mosaic.version = 11 : i64} {
  func.func @output_module_kernel(%arg0: i32, %arg1: memref<2x32xf32, #tpu.memory_space<vmem>>, %arg2: memref<2x4x32xf32, #tpu.memory_space<vmem>>, %arg3: memref<32x32xbf16, #tpu.memory_space<vmem>>, %arg4: memref<256x32xbf16, #tpu.memory_space<vmem>>, %arg5: memref<2x256xf32, #tpu.memory_space<vmem>>) attributes {dimension_semantics = [#tpu.dimension_semantics<parallel>], iteration_bounds = array<i64: 4>, scalar_prefetch = 0 : i64, scratch_operands = 0 : i64, tpu.core_type = #tpu.core_type<tc>, window_params = [{pipeline_mode = #tpu.pipeline_mode<synchronous>, transform_indices = @transform_0, window_bounds = array<i64: 2, 32>}, {pipeline_mode = #tpu.pipeline_mode<synchronous>, transform_indices = @transform_1, window_bounds = array<i64: 2, 4, 32>}, {pipeline_mode = #tpu.pipeline_mode<synchronous>, transform_indices = @transform_2, window_bounds = array<i64: 32, 32>}, {transform_indices = @transform_3, window_bounds = array<i64: 256, 32>}, {transform_indices = @transform_4, window_bounds = array<i64: 2, 256>}]} {
    %c0 = arith.constant 0 : index
    %c0_0 = arith.constant 0 : index
    %0 = vector.load %arg1[%c0, %c0_0] : memref<2x32xf32, #tpu.memory_space<vmem>>, vector<2x32xf32>
    %c0_1 = arith.constant 0 : index
    %c0_2 = arith.constant 0 : index
    %c0_3 = arith.constant 0 : index
    %1 = vector.load %arg2[%c0_1, %c0_2, %c0_3] : memref<2x4x32xf32, #tpu.memory_space<vmem>>, vector<2x4x32xf32>
    %2 = vector.shape_cast %0 : vector<2x32xf32> to vector<2x1x32xf32>
    "tpu.trace_start"() <{level = 10 : i32, message = "bqe,bke->bqk"}> : () -> ()
    %cst = arith.constant dense<0.000000e+00> : vector<2x1x4xf32>
    %3 = tpu.matmul %2, %1, %cst {dimension_numbers = #tpu.dot_dimension_numbers<[2], [2], [1], [1], [0, 0, 0, 1, 1, 1], [0], [0]>} : vector<2x1x32xf32>, vector<2x4x32xf32>, vector<2x1x4xf32> -> vector<2x1x4xf32>
    "tpu.trace_stop"() : () -> ()
    %cst_4 = arith.constant dense<0xFF800000> : vector<2x1xf32>
    %4 = vector.multi_reduction <maximumf>, %3, %cst_4 [2] : vector<2x1x4xf32> to vector<2x1xf32>
    %5 = vector.shape_cast %4 : vector<2x1xf32> to vector<2x1x1xf32>
    %6 = vector.broadcast %5 : vector<2x1x1xf32> to vector<2x1x4xf32>
    %7 = arith.subf %3, %6 : vector<2x1x4xf32>
    %8 = math.exp %7 : vector<2x1x4xf32>
    %cst_5 = arith.constant dense<0.000000e+00> : vector<2x1xf32>
    %9 = vector.multi_reduction <add>, %8, %cst_5 [2] : vector<2x1x4xf32> to vector<2x1xf32>
    %10 = vector.shape_cast %9 : vector<2x1xf32> to vector<2x1x1xf32>
    %11 = tpu.reciprocal %10 {approx = true} : vector<2x1x1xf32> -> vector<2x1x1xf32>
    %12 = vector.broadcast %11 : vector<2x1x1xf32> to vector<2x1x4xf32>
    %13 = arith.mulf %8, %12 : vector<2x1x4xf32>
    "tpu.trace_start"() <{level = 10 : i32, message = "bqk,bke->bqe"}> : () -> ()
    %cst_6 = arith.constant dense<0.000000e+00> : vector<2x1x32xf32>
    %14 = tpu.matmul %13, %1, %cst_6 {dimension_numbers = #tpu.dot_dimension_numbers<[2], [1], [1], [2], [0, 0, 0, 1, 1, 2], [0], [0]>} : vector<2x1x4xf32>, vector<2x4x32xf32>, vector<2x1x32xf32> -> vector<2x1x32xf32>
    "tpu.trace_stop"() : () -> ()
    %cst_7 = arith.constant dense<0.000000e+00> : vector<2x32xf32>
    %15 = vector.multi_reduction <add>, %14, %cst_7 [1] : vector<2x1x32xf32> to vector<2x32xf32>
    %16 = arith.truncf %15 : vector<2x32xf32> to vector<2x32xbf16>
    %c0_8 = arith.constant 0 : index
    %c0_9 = arith.constant 0 : index
    %17 = vector.load %arg3[%c0_8, %c0_9] : memref<32x32xbf16, #tpu.memory_space<vmem>>, vector<32x32xbf16>
    %cst_10 = arith.constant dense<0.000000e+00> : vector<2x32xf32>
    %18 = tpu.matmul %16, %17, %cst_10 {dimension_numbers = #tpu.dot_dimension_numbers<[1], [1], [0], [0], [0, 0, 1, 0], [], []>} : vector<2x32xbf16>, vector<32x32xbf16>, vector<2x32xf32> -> vector<2x32xf32>
    %19 = arith.addf %0, %18 : vector<2x32xf32>
    %cst_11 = arith.constant 0.000000e+00 : f32
    %20 = vector.broadcast %cst_11 : f32 to vector<2x32xf32>
    %21 = arith.maximumf %19, %20 : vector<2x32xf32>
    %22 = arith.truncf %21 : vector<2x32xf32> to vector<2x32xbf16>
    %c0_12 = arith.constant 0 : index
    %c0_13 = arith.constant 0 : index
    %23 = vector.load %arg4[%c0_12, %c0_13] : memref<256x32xbf16, #tpu.memory_space<vmem>>, vector<256x32xbf16>
    %cst_14 = arith.constant dense<0.000000e+00> : vector<2x256xf32>
    %24 = tpu.matmul %22, %23, %cst_14 {dimension_numbers = #tpu.dot_dimension_numbers<[1], [1], [0], [0], [0, 0, 1, 0], [], []>} : vector<2x32xbf16>, vector<256x32xbf16>, vector<2x256xf32> -> vector<2x256xf32>
    %c0_15 = arith.constant 0 : index
    %c0_16 = arith.constant 0 : index
    %25 = vector.load %arg5[%c0_15, %c0_16] : memref<2x256xf32, #tpu.memory_space<vmem>>, vector<2x256xf32>
    tpu.vector_store %arg5[%c0_15, %c0_16], %24 {strides = array<i32>} : memref<2x256xf32, #tpu.memory_space<vmem>>, vector<2x256xf32>,
    return
  }
  func.func @transform_0(%arg0: i32) -> (i32, i32) {
    %c0_i32 = arith.constant 0 : i32
    %c0_i32_0 = arith.constant 0 : i32
    %c0_i32_1 = arith.constant 0 : i32
    return %c0_i32, %c0_i32_0 : i32, i32
  }
  func.func @transform_1(%arg0: i32) -> (i32, i32, i32) {
    %c0_i32 = arith.constant 0 : i32
    %c0_i32_0 = arith.constant 0 : i32
    %c0_i32_1 = arith.constant 0 : i32
    %c0_i32_2 = arith.constant 0 : i32
    return %c0_i32, %c0_i32_0, %c0_i32_1 : i32, i32, i32
  }
  func.func @transform_2(%arg0: i32) -> (i32, i32) {
    %c0_i32 = arith.constant 0 : i32
    %c0_i32_0 = arith.constant 0 : i32
    %c0_i32_1 = arith.constant 0 : i32
    return %c0_i32, %c0_i32_0 : i32, i32
  }
  func.func @transform_3(%arg0: i32) -> (i32, i32) {
    %c0_i32 = arith.constant 0 : i32
    %c0_i32_0 = arith.constant 0 : i32
    return %arg0, %c0_i32 : i32, i32
  }
  func.func @transform_4(%arg0: i32) -> (i32, i32) {
    %c0_i32 = arith.constant 0 : i32
    %c0_i32_0 = arith.constant 0 : i32
    return %c0_i32, %arg0 : i32, i32
  }
}

</mosaic_0001>

<llo_original>
// kernel: output_module_forward.1
$region0: #{output_module_forward.1}
  #allocation0 [shape = 'u32[]', space=smem, size = 0x4, offset = 0x4, fixed_abs, tag = 'smem constant byte address 0x4 - core index']
  #allocation1 [shape = 'u32[144,128]{1,0:T(1,128)}', space=vmem, size = 0x12000, scoped, tag = 'internal scratch']
  %s0 = inlined_call_operand.vmem [shape: f32[2,32], index: 0, kind: input, shape index: {}]
  %s1 = inlined_call_operand.vmem [shape: f32[2,4,32], index: 1, kind: input, shape index: {}]
  %s2 = inlined_call_operand.vmem [shape: bf16[32,32], index: 2, kind: input, shape index: {}]
  %s3 = inlined_call_operand.vmem [shape: bf16[1024,32], index: 3, kind: input, shape index: {}]
  %s4 = inlined_call_operand.hbm [shape: f32[2,1024], index: 4, kind: output, shape index: {}]
  %s5 = sld [smem:[#allocation0]]
  $region49: #{output_module_forward.1} parent=0
    _
  %s7 = ssub.s32 1, %s5
  %s8 = scalar_select 0, %s7, %s5
  $region1: #{output_module_forward.1} parent=0
    #allocation2 [shape = 'u8[4096]{0}', space=vmem, size = 0x1000, scoped, tag = 'output window, operand 0']
    #allocation3 [shape = 's32[2]{0}', space=sflag, size = 0x8, scoped, tag = 'scoped memory for output_module_forward.1']
    %9 = vsyncpa [#allocation3], 0
    %s10 = scalar_lea.sflag [#allocation3], 1
    %11 = vsyncpa %s10, 0
    loop: start=0, step=1, limit=6
    $region2: #{output_module_forward.1} parent=1 // loop_pre_header
      _
    $region3: #{output_module_forward.1} parent=1 // loop_header
      %s13 = sphi 0, %s17
      %p14 = scmp.ge.s32.totalorder %s13, 6
      %s21 = sphi 0, %s21
      %s23 = sphi 0, %s21
      %s24 = sphi 0, %s23
      %s38 = sphi 0, %s24
      %s42 = sphi 0, %s42
      %s44 = sphi 0, %s42
      %s45 = sphi 0, %s44
      %s59 = sphi 0, %s45
      %s63 = sphi 0, %s63
      %s65 = sphi 0, %s63
      %s66 = sphi 0, %s65
      %s80 = sphi 0, %s66
      %s86 = sphi 0, %s88
      %s89 = sphi 0, %s86
      %s90 = sphi 0, %s89
      %s106 = sphi 0, %s90
      %s112 = sphi 0, %s114
      %s115 = sphi 0, %s112
      %s116 = sphi 0, %s115
      %s132 = sphi 0, %s116
    $region4: #{output_module_forward.1} parent=1 // loop_header_branch
      %16 = sbr.rel (%p14) target = $region8
    $region5: #{output_module_forward.1} parent=1 // loop_body
      %s18 = ssub.s32 %s13, 1
      %s19 = ssub.s32 %s13, 2
      %s20 = sadd.s32 %s13, 1
      %s22 = sadd.s32 %s21, 1
      %p25 = scmp.eq.s32.totalorder %s13, 3
      %p26 = scmp.ne.s32.totalorder %s21, %s23
      %p27 = scmp.eq.s32.totalorder %s13, 0
      %p28 = por %p26, %p27
      %p29 = scmp.ne.s32.totalorder %s21, %s23
      %p30 = scmp.eq.s32.totalorder %s18, 3
      %p31 = por %p29, %p30
      %p32 = scmp.ne.s32.totalorder %s23, %s24
      %p33 = scmp.eq.s32.totalorder %s18, 0
      %p34 = por %p32, %p33
      %p35 = scmp.ne.s32.totalorder %s23, %s24
      %p36 = scmp.eq.s32.totalorder %s19, 3
      %p37 = por %p35, %p36
      %p39 = scmp.ne.s32.totalorder %s24, %s38
      %p40 = scmp.eq.s32.totalorder %s19, 0
      %p41 = por %p39, %p40
      %s43 = sadd.s32 %s42, 1
      %p46 = scmp.eq.s32.totalorder %s13, 3
      %p47 = scmp.ne.s32.totalorder %s42, %s44
      %p48 = scmp.eq.s32.totalorder %s13, 0
      %p49 = por %p47, %p48
      %p50 = scmp.ne.s32.totalorder %s42, %s44
      %p51 = scmp.eq.s32.totalorder %s18, 3
      %p52 = por %p50, %p51
      %p53 = scmp.ne.s32.totalorder %s44, %s45
      %p54 = scmp.eq.s32.totalorder %s18, 0
      %p55 = por %p53, %p54
      %p56 = scmp.ne.s32.totalorder %s44, %s45
      %p57 = scmp.eq.s32.totalorder %s19, 3
      %p58 = por %p56, %p57
      %p60 = scmp.ne.s32.totalorder %s45, %s59
      %p61 = scmp.eq.s32.totalorder %s19, 0
      %p62 = por %p60, %p61
      %s64 = sadd.s32 %s63, 1
      %p67 = scmp.eq.s32.totalorder %s13, 3
      %p68 = scmp.ne.s32.totalorder %s63, %s65
      %p69 = scmp.eq.s32.totalorder %s13, 0
      %p70 = por %p68, %p69
      %p71 = scmp.ne.s32.totalorder %s63, %s65
      %p72 = scmp.eq.s32.totalorder %s18, 3
      %p73 = por %p71, %p72
      %p74 = scmp.ne.s32.totalorder %s65, %s66
      %p75 = scmp.eq.s32.totalorder %s18, 0
      %p76 = por %p74, %p75
      %p77 = scmp.ne.s32.totalorder %s65, %s66
      %p78 = scmp.eq.s32.totalorder %s19, 3
      %p79 = por %p77, %p78
      %p81 = scmp.ne.s32.totalorder %s66, %s80
      %p82 = scmp.eq.s32.totalorder %s19, 0
      %p83 = por %p81, %p82
      %s84 = ssub.s32 %s13, %s20
      %p85 = scmp.eq.s32.totalorder %s84, 0
      %s87 = sadd.s32 %s86, 1
      %s88 = scalar_select %p85, %s86, %s87
      %p91 = pneg %p85
      %p92 = scmp.eq.s32.totalorder %s13, 3
      %p93 = por %p91, %p92
      %p94 = scmp.ne.s32.totalorder %s86, %s89
      %p95 = scmp.eq.s32.totalorder %s13, 0
      %p96 = por %p94, %p95
      %p97 = scmp.ne.s32.totalorder %s86, %s89
      %p98 = scmp.eq.s32.totalorder %s18, 3
      %p99 = por %p97, %p98
      %p100 = scmp.ne.s32.totalorder %s89, %s90
      %p101 = scmp.eq.s32.totalorder %s18, 0
      %p102 = por %p100, %p101
      %p103 = scmp.ne.s32.totalorder %s89, %s90
      %p104 = scmp.eq.s32.totalorder %s19, 3
      %p105 = por %p103, %p104
      %p107 = scmp.ne.s32.totalorder %s90, %s106
      %p108 = scmp.eq.s32.totalorder %s19, 0
      %p109 = por %p107, %p108
      %s110 = ssub.s32 %s13, %s20
      %p111 = scmp.eq.s32.totalorder %s110, 0
      %s113 = sadd.s32 %s112, 1
      %s114 = scalar_select %p111, %s112, %s113
      %p117 = pneg %p111
      %p118 = scmp.eq.s32.totalorder %s13, 3
      %p119 = por %p117, %p118
      %p120 = scmp.ne.s32.totalorder %s112, %s115
      %p121 = scmp.eq.s32.totalorder %s13, 0
      %p122 = por %p120, %p121
      %p123 = scmp.ne.s32.totalorder %s112, %s115
      %p124 = scmp.eq.s32.totalorder %s18, 3
      %p125 = por %p123, %p124
      %p126 = scmp.ne.s32.totalorder %s115, %s116
      %p127 = scmp.eq.s32.totalorder %s18, 0
      %p128 = por %p126, %p127
      %p129 = scmp.ne.s32.totalorder %s115, %s116
      %p130 = scmp.eq.s32.totalorder %s19, 3
      %p131 = por %p129, %p130
      %p133 = scmp.ne.s32.totalorder %s116, %s132
      %p134 = scmp.eq.s32.totalorder %s19, 0
      %p135 = por %p133, %p134
      %p136 = scmp.le.s32.totalorder 1, %s13
      %p137 = scmp.lt.s32.totalorder %s13, 5
      %p138 = pnand %p136, %p137
      %p139 = pneg %p138
      // Predicated region
      $region9: #{output_module_forward.1} parent=5 // pred_check
        _
      $region10: #{output_module_forward.1} parent=5 // pred_check_branch
        %141 = sbr.rel (%p138) target = $region12
      $region11: #{output_module_forward.1} parent=5 // pred_region
        %s142 = ssub.s32 %s13, 1
        // Predicated region
        $region13: #{output_module_forward.1} parent=11 // pred_check
          %p143 = pneg %p34
        $region14: #{output_module_forward.1} parent=11 // pred_check_branch
          %145 = sbr.rel (%p143) target = $region16
        $region15: #{output_module_forward.1} parent=11 // pred_region
          _
        $region16: #{output_module_forward.1} parent=11 // pred_fallthru
          _
        // Predicated region
        $region17: #{output_module_forward.1} parent=11 // pred_check
          %p146 = pneg %p55
        $region18: #{output_module_forward.1} parent=11 // pred_check_branch
          %148 = sbr.rel (%p146) target = $region20
        $region19: #{output_module_forward.1} parent=11 // pred_region
          _
        $region20: #{output_module_forward.1} parent=11 // pred_fallthru
          _
        // Predicated region
        $region21: #{output_module_forward.1} parent=11 // pred_check
          %p149 = pneg %p76
        $region22: #{output_module_forward.1} parent=11 // pred_check_branch
          %151 = sbr.rel (%p149) target = $region24
        $region23: #{output_module_forward.1} parent=11 // pred_region
          _
        $region24: #{output_module_forward.1} parent=11 // pred_fallthru
          _
      $region12: #{output_module_forward.1} parent=5 // pred_fallthru
        _
      %p152 = scmp.lt.s32.totalorder %s13, 4
      // Predicated region
      $region25: #{output_module_forward.1} parent=5 // pred_check
        %p153 = pneg %p152
      $region26: #{output_module_forward.1} parent=5 // pred_check_branch
        %155 = sbr.rel (%p153) target = $region28
      $region27: #{output_module_forward.1} parent=5 // pred_region
        // Predicated region
        $region29: #{output_module_forward.1} parent=27 // pred_check
          %p156 = pneg %p96
        $region30: #{output_module_forward.1} parent=27 // pred_check_branch
          %158 = sbr.rel (%p156) target = $region32
        $region31: #{output_module_forward.1} parent=27 // pred_region
          %s159 = smul.u32 32, %s13
          %p160 = scmp.lt.s32.totalorder %s159, 127
          %s161 = scalar_select %p160, %s159, 127
          %s162 = smul.addr %s161, 4
          %s163 = scalar_lea.vmem %s3, %s162
          %s164 = smul.u32 32, %s13
        $region32: #{output_module_forward.1} parent=27 // pred_fallthru
          _
      $region28: #{output_module_forward.1} parent=5 // pred_fallthru
        _
      %p165 = scmp.le.s32.totalorder 1, %s13
      %p166 = scmp.lt.s32.totalorder %s13, 5
      %p167 = pnand %p165, %p166
      %p168 = pneg %p167
      // Predicated region
      $region33: #{output_module_forward.1} parent=5 // pred_check
        _
      $region34: #{output_module_forward.1} parent=5 // pred_check_branch
        %170 = sbr.rel (%p167) target = $region36
      $region35: #{output_module_forward.1} parent=5 // pred_region
        %s171 = ssub.s32 %s13, 1
        %p172 = pneg %p34
        %p173 = pneg %p31
        %p174 = pneg %p55
        %p175 = pneg %p52
        %p176 = pneg %p76
        %p177 = pneg %p73
        %s178 = smul.u32 32, %s18
        %p179 = scmp.lt.s32.totalorder %s178, 127
        %s180 = scalar_select %p179, %s178, 127
        %s181 = smul.addr %s180, 4
        %s182 = scalar_lea.vmem %s3, %s181
        %p183 = pneg %p102
        %p184 = pneg %p99
        %p185 = pneg %p128
        %p186 = pneg %p125
        %s187 = sand.u32 %s115, 1
        %s188 = scalar_lea.sflag [#allocation3], %s187
        %s189 = sand.u32 %s115, 1
        %s190 = smul.addr %s189, 4
        %s191 = scalar_lea.vmem [#allocation2], %s190
        %s192 = smul.u32 32, %s18
        %p193 = scmp.lt.s32.totalorder %s192, 127
        %s194 = scalar_select %p193, %s192, 127
        %s195 = smul.addr %s194, 4
        %s196 = scalar_lea.vmem %s3, %s195
        %s197 = smul.u32 32, %s18
        %s198 = smul.u32 2, %s18
        %v200 = vld [vmem:[%s0] sm:$0x3]
        %v201 = vld [vmem:[%s1] sm:$0xf]
        %v202 = vld [vmem:[%s1 + $0x4] sm:$0xf]
        %v205 = vunpack.c.l.s4 1966171168
        %v206 = vunpack.c.0.s8 %v205
        %v207 = vlaneseq
        %v208 = vshrl.u32 %v207, 7
        %v209 = vsub.s32 %v206, %v208
        %v210 = vrot.slane %v200, %v209
        %v211 = vcombine.high %v210, %v210
        %v213 = vunpack.c.l.s4 1966171168
        %v214 = vunpack.c.0.s8 %v213
        %v215 = vlaneseq
        %v216 = vshrl.u32 %v215, 7
        %v217 = vsub.s32 %v214, %v216
        %v218 = vrot.slane %v210, %v217
        %v220 = vunpack.c.l.s4 1966171168
        %v221 = vunpack.c.0.s8 %v220
        %v222 = vlaneseq
        %v223 = vshrl.u32 %v222, 7
        %v224 = vsub.s32 %v221, %v223
        %v225 = vrot.slane %v211, %v224
        %vm226 = vcmask 261120
        %v227 = vsel %vm226, %v218, 0
        %v230 = vsel %vm226, %v201, 0
        %232 = vmatprep.subr.mxu0 0.0
        %233 = vmatpush1.xpose.msra.mxu0 0.0
        %234 = vmatprep.subr.mxu0 0.0
        %235 = vmatpush1.xpose.msra.mxu0 0.0
        %236 = vmatprep.subr.mxu0 0.0
        %237 = vmatpush1.xpose.msra.mxu0 0.0
        %238 = vmatprep.subr.mxu0 0.0
        %239 = vmatpush1.xpose.msra.mxu0 0.0
        %240 = vmatprep.subr.mxu0 0.0
        %241 = vmatpush1.xpose.msra.mxu0 0.0
        %242 = vmatprep.subr.mxu0 0.0
        %243 = vmatpush1.xpose.msra.mxu0 0.0
        %244 = vmatprep.subr.mxu0 0.0
        %245 = vmatpush1.xpose.msra.mxu0 0.0
        %246 = vmatprep.subr.mxu0 0.0
        %247 = vmatpush1.xpose.msra.mxu0 0.0
        %248 = vmatprep.subr.mxu0 0.0
        %249 = vmatpush1.xpose.msra.mxu0 0.0
        %250 = vmatprep.subr.mxu0 0.0
        %251 = vmatpush1.xpose.msra.mxu0 0.0
        %252 = vmatprep.subr.mxu0 0.0
        %253 = vmatpush1.xpose.msra.mxu0 0.0
        %254 = vmatprep.subr.mxu0 0.0
        %255 = vmatpush1.xpose.msra.mxu0 0.0
        %256 = vmatprep.subr.mxu0 0.0
        %257 = vmatpush1.xpose.msra.mxu0 0.0
        %258 = vmatprep.subr.mxu0 0.0
        %259 = vmatpush1.xpose.msra.mxu0 0.0
        %260 = vmatprep.subr.mxu0 0.0
        %261 = vmatpush1.xpose.msra.mxu0 0.0
        %262 = vmatprep.subr.mxu0 0.0
        %263 = vmatpush1.xpose.msra.mxu0 %v230
        %264 = vmatprep.subr.mxu0 0.0
        %265 = vmatpush2.xpose.msra.mxu0 0.0
        %266 = vmatprep.subr.mxu0 0.0
        %267 = vmatpush2.xpose.msra.mxu0 0.0
        %268 = vmatprep.subr.mxu0 0.0
        %269 = vmatpush2.xpose.msra.mxu0 0.0
        %270 = vmatprep.subr.mxu0 0.0
        %271 = vmatpush2.xpose.msra.mxu0 0.0
        %272 = vmatprep.subr.mxu0 0.0
        %273 = vmatpush2.xpose.msra.mxu0 0.0
        %274 = vmatprep.subr.mxu0 0.0
        %275 = vmatpush2.xpose.msra.mxu0 0.0
        %276 = vmatprep.subr.mxu0 0.0
        %277 = vmatpush2.xpose.msra.mxu0 0.0
        %278 = vmatprep.subr.mxu0 0.0
        %279 = vmatpush2.xpose.msra.mxu0 0.0
        %280 = vmatprep.subr.mxu0 0.0
        %281 = vmatpush2.xpose.msra.mxu0 0.0
        %282 = vmatprep.subr.mxu0 0.0
        %283 = vmatpush2.xpose.msra.mxu0 0.0
        %284 = vmatprep.subr.mxu0 0.0
        %285 = vmatpush2.xpose.msra.mxu0 0.0
        %286 = vmatprep.subr.mxu0 0.0
        %287 = vmatpush2.xpose.msra.mxu0 0.0
        %288 = vmatprep.subr.mxu0 0.0
        %289 = vmatpush2.xpose.msra.mxu0 0.0
        %290 = vmatprep.subr.mxu0 0.0
        %291 = vmatpush2.xpose.msra.mxu0 0.0
        %292 = vmatprep.subr.mxu0 0.0
        %293 = vmatpush2.xpose.msra.mxu0 0.0
        %294 = vmatprep.subr.mxu0 0.0
        %295 = vmatpush2.xpose.msra.mxu0 0.0
        %296 = vmatprep.mubr.f32.mxu0 0.0
        %297 = vmatmul.mubr.f32.gmra.mxu0 %v227
        %v298 = vpop.f32.mrf.mxu0
        %v299 = vadd.f32 0.0, %v298
        %v300 = vpop.f32.mrf.mxu0
        %301 = vdwg.mxu0
        %v302 = vsel %vm226, %v225, 0
        %v305 = vsel %vm226, %v202, 0
        %307 = vmatprep.subr.mxu0 0.0
        %308 = vmatpush1.xpose.msra.mxu0 0.0
        %309 = vmatprep.subr.mxu0 0.0
        %310 = vmatpush1.xpose.msra.mxu0 0.0
        %311 = vmatprep.subr.mxu0 0.0
        %312 = vmatpush1.xpose.msra.mxu0 0.0
        %313 = vmatprep.subr.mxu0 0.0
        %314 = vmatpush1.xpose.msra.mxu0 0.0
        %315 = vmatprep.subr.mxu0 0.0
        %316 = vmatpush1.xpose.msra.mxu0 0.0
        %317 = vmatprep.subr.mxu0 0.0
        %318 = vmatpush1.xpose.msra.mxu0 0.0
        %319 = vmatprep.subr.mxu0 0.0
        %320 = vmatpush1.xpose.msra.mxu0 0.0
        %321 = vmatprep.subr.mxu0 0.0
        %322 = vmatpush1.xpose.msra.mxu0 0.0
        %323 = vmatprep.subr.mxu0 0.0
        %324 = vmatpush1.xpose.msra.mxu0 0.0
        %325 = vmatprep.subr.mxu0 0.0
        %326 = vmatpush1.xpose.msra.mxu0 0.0
        %327 = vmatprep.subr.mxu0 0.0
        %328 = vmatpush1.xpose.msra.mxu0 0.0
        %329 = vmatprep.subr.mxu0 0.0
        %330 = vmatpush1.xpose.msra.mxu0 0.0
        %331 = vmatprep.subr.mxu0 0.0
        %332 = vmatpush1.xpose.msra.mxu0 0.0
        %333 = vmatprep.subr.mxu0 0.0
        %334 = vmatpush1.xpose.msra.mxu0 0.0
        %335 = vmatprep.subr.mxu0 0.0
        %336 = vmatpush1.xpose.msra.mxu0 0.0
        %337 = vmatprep.subr.mxu0 0.0
        %338 = vmatpush1.xpose.msra.mxu0 %v305
        %339 = vmatprep.subr.mxu0 0.0
        %340 = vmatpush2.xpose.msra.mxu0 0.0
        %341 = vmatprep.subr.mxu0 0.0
        %342 = vmatpush2.xpose.msra.mxu0 0.0
        %343 = vmatprep.subr.mxu0 0.0
        %344 = vmatpush2.xpose.msra.mxu0 0.0
        %345 = vmatprep.subr.mxu0 0.0
        %346 = vmatpush2.xpose.msra.mxu0 0.0
        %347 = vmatprep.subr.mxu0 0.0
        %348 = vmatpush2.xpose.msra.mxu0 0.0
        %349 = vmatprep.subr.mxu0 0.0
        %350 = vmatpush2.xpose.msra.mxu0 0.0
        %351 = vmatprep.subr.mxu0 0.0
        %352 = vmatpush2.xpose.msra.mxu0 0.0
        %353 = vmatprep.subr.mxu0 0.0
        %354 = vmatpush2.xpose.msra.mxu0 0.0
        %355 = vmatprep.subr.mxu0 0.0
        %356 = vmatpush2.xpose.msra.mxu0 0.0
        %357 = vmatprep.subr.mxu0 0.0
        %358 = vmatpush2.xpose.msra.mxu0 0.0
        %359 = vmatprep.subr.mxu0 0.0
        %360 = vmatpush2.xpose.msra.mxu0 0.0
        %361 = vmatprep.subr.mxu0 0.0
        %362 = vmatpush2.xpose.msra.mxu0 0.0
        %363 = vmatprep.subr.mxu0 0.0
        %364 = vmatpush2.xpose.msra.mxu0 0.0
        %365 = vmatprep.subr.mxu0 0.0
        %366 = vmatpush2.xpose.msra.mxu0 0.0
        %367 = vmatprep.subr.mxu0 0.0
        %368 = vmatpush2.xpose.msra.mxu0 0.0
        %369 = vmatprep.subr.mxu0 0.0
        %370 = vmatpush2.xpose.msra.mxu0 0.0
        %371 = vmatprep.mubr.f32.mxu0 0.0
        %372 = vmatmul.mubr.f32.gmra.mxu0 %v302
        %v373 = vpop.f32.mrf.mxu0
        %v374 = vadd.f32 0.0, %v373
        %v375 = vpop.f32.mrf.mxu0
        %376 = vdwg.mxu0
        %vm377 = vcmask 24576
        %v378 = vsel %vm377, %v299, -inf
        %379 = vmax.xlane.f32.xlu0 %v378
        %v380 = vpop.xlane.xlu0 %379
        %v381 = vsel %vm377, %v374, -inf
        %382 = vmax.xlane.f32.xlu0 %v381
        %v383 = vpop.xlane.xlu0 %382
        %v384 = vsub.f32 %v299, %v380
        %v385 = vsub.f32 %v374, %v383
        %v386 = vmul.f32 %v384, 1.442695
        %v387 = vpow.pop %v386
        %v388 = vmul.f32 %v385, 1.442695
        %v389 = vpow.pop %v388
        %v390 = vsel %vm377, %v387, 0.0
        %391 = vadd.xlane.f32.xlu0 %v390
        %v392 = vpop.xlane.xlu0 %391
        %v393 = vsel %vm377, %v389, 0.0
        %394 = vadd.xlane.f32.xlu0 %v393
        %v395 = vpop.xlane.xlu0 %394
        %v396 = vrcp.pop %v392
        %v397 = vrcp.pop %v395
        %v398 = vmul.f32 %v387, %v396
        %v399 = vmul.f32 %v389, %v397
        %vm400 = vcmask 31744
        %v402 = vsel %vm400, %v398, 0
        %vm404 = vcmask 1043456
        %v405 = vsel %vm404, %v201, 0
        %407 = vmatprep.subr.mxu0 0.0
        %408 = vmatpush1.msra.mxu0 0.0
        %409 = vmatprep.subr.mxu0 0.0
        %410 = vmatpush1.msra.mxu0 0.0
        %411 = vmatprep.subr.mxu0 0.0
        %412 = vmatpush1.msra.mxu0 0.0
        %413 = vmatprep.subr.mxu0 0.0
        %414 = vmatpush1.msra.mxu0 0.0
        %415 = vmatprep.subr.mxu0 0.0
        %416 = vmatpush1.msra.mxu0 0.0
        %417 = vmatprep.subr.mxu0 0.0
        %418 = vmatpush1.msra.mxu0 0.0
        %419 = vmatprep.subr.mxu0 0.0
        %420 = vmatpush1.msra.mxu0 0.0
        %421 = vmatprep.subr.mxu0 0.0
        %422 = vmatpush1.msra.mxu0 0.0
        %423 = vmatprep.subr.mxu0 0.0
        %424 = vmatpush1.msra.mxu0 0.0
        %425 = vmatprep.subr.mxu0 0.0
        %426 = vmatpush1.msra.mxu0 0.0
        %427 = vmatprep.subr.mxu0 0.0
        %428 = vmatpush1.msra.mxu0 0.0
        %429 = vmatprep.subr.mxu0 0.0
        %430 = vmatpush1.msra.mxu0 0.0
        %431 = vmatprep.subr.mxu0 0.0
        %432 = vmatpush1.msra.mxu0 0.0
        %433 = vmatprep.subr.mxu0 0.0
        %434 = vmatpush1.msra.mxu0 0.0
        %435 = vmatprep.subr.mxu0 0.0
        %436 = vmatpush1.msra.mxu0 0.0
        %437 = vmatprep.subr.mxu0 0.0
        %438 = vmatpush1.msra.mxu0 %v405
        %439 = vmatprep.subr.mxu0 0.0
        %440 = vmatpush2.msra.mxu0 0.0
        %441 = vmatprep.subr.mxu0 0.0
        %442 = vmatpush2.msra.mxu0 0.0
        %443 = vmatprep.subr.mxu0 0.0
        %444 = vmatpush2.msra.mxu0 0.0
        %445 = vmatprep.subr.mxu0 0.0
        %446 = vmatpush2.msra.mxu0 0.0
        %447 = vmatprep.subr.mxu0 0.0
        %448 = vmatpush2.msra.mxu0 0.0
        %449 = vmatprep.subr.mxu0 0.0
        %450 = vmatpush2.msra.mxu0 0.0
        %451 = vmatprep.subr.mxu0 0.0
        %452 = vmatpush2.msra.mxu0 0.0
        %453 = vmatprep.subr.mxu0 0.0
        %454 = vmatpush2.msra.mxu0 0.0
        %455 = vmatprep.subr.mxu0 0.0
        %456 = vmatpush2.msra.mxu0 0.0
        %457 = vmatprep.subr.mxu0 0.0
        %458 = vmatpush2.msra.mxu0 0.0
        %459 = vmatprep.subr.mxu0 0.0
        %460 = vmatpush2.msra.mxu0 0.0
        %461 = vmatprep.subr.mxu0 0.0
        %462 = vmatpush2.msra.mxu0 0.0
        %463 = vmatprep.subr.mxu0 0.0
        %464 = vmatpush2.msra.mxu0 0.0
        %465 = vmatprep.subr.mxu0 0.0
        %466 = vmatpush2.msra.mxu0 0.0
        %467 = vmatprep.subr.mxu0 0.0
        %468 = vmatpush2.msra.mxu0 0.0
        %469 = vmatprep.subr.mxu0 0.0
        %470 = vmatpush2.msra.mxu0 0.0
        %471 = vmatprep.mubr.f32.mxu0 0.0
        %472 = vmatmul.mubr.f32.gmra.mxu0 %v402
        %v473 = vpop.f32.mrf.mxu0
        %v474 = vadd.f32 0.0, %v473
        %v475 = vpop.f32.mrf.mxu0
        %476 = vdwg.mxu0
        %v478 = vsel %vm400, %v399, 0
        %v480 = vsel %vm404, %v202, 0
        %482 = vmatprep.subr.mxu0 0.0
        %483 = vmatpush1.msra.mxu0 0.0
        %484 = vmatprep.subr.mxu0 0.0
        %485 = vmatpush1.msra.mxu0 0.0
        %486 = vmatprep.subr.mxu0 0.0
        %487 = vmatpush1.msra.mxu0 0.0
        %488 = vmatprep.subr.mxu0 0.0
        %489 = vmatpush1.msra.mxu0 0.0
        %490 = vmatprep.subr.mxu0 0.0
        %491 = vmatpush1.msra.mxu0 0.0
        %492 = vmatprep.subr.mxu0 0.0
        %493 = vmatpush1.msra.mxu0 0.0
        %494 = vmatprep.subr.mxu0 0.0
        %495 = vmatpush1.msra.mxu0 0.0
        %496 = vmatprep.subr.mxu0 0.0
        %497 = vmatpush1.msra.mxu0 0.0
        %498 = vmatprep.subr.mxu0 0.0
        %499 = vmatpush1.msra.mxu0 0.0
        %500 = vmatprep.subr.mxu0 0.0
        %501 = vmatpush1.msra.mxu0 0.0
        %502 = vmatprep.subr.mxu0 0.0
        %503 = vmatpush1.msra.mxu0 0.0
        %504 = vmatprep.subr.mxu0 0.0
        %505 = vmatpush1.msra.mxu0 0.0
        %506 = vmatprep.subr.mxu0 0.0
        %507 = vmatpush1.msra.mxu0 0.0
        %508 = vmatprep.subr.mxu0 0.0
        %509 = vmatpush1.msra.mxu0 0.0
        %510 = vmatprep.subr.mxu0 0.0
        %511 = vmatpush1.msra.mxu0 0.0
        %512 = vmatprep.subr.mxu0 0.0
        %513 = vmatpush1.msra.mxu0 %v480
        %514 = vmatprep.subr.mxu0 0.0
        %515 = vmatpush2.msra.mxu0 0.0
        %516 = vmatprep.subr.mxu0 0.0
        %517 = vmatpush2.msra.mxu0 0.0
        %518 = vmatprep.subr.mxu0 0.0
        %519 = vmatpush2.msra.mxu0 0.0
        %520 = vmatprep.subr.mxu0 0.0
        %521 = vmatpush2.msra.mxu0 0.0
        %522 = vmatprep.subr.mxu0 0.0
        %523 = vmatpush2.msra.mxu0 0.0
        %524 = vmatprep.subr.mxu0 0.0
        %525 = vmatpush2.msra.mxu0 0.0
        %526 = vmatprep.subr.mxu0 0.0
        %527 = vmatpush2.msra.mxu0 0.0
        %528 = vmatprep.subr.mxu0 0.0
        %529 = vmatpush2.msra.mxu0 0.0
        %530 = vmatprep.subr.mxu0 0.0
        %531 = vmatpush2.msra.mxu0 0.0
        %532 = vmatprep.subr.mxu0 0.0
        %533 = vmatpush2.msra.mxu0 0.0
        %534 = vmatprep.subr.mxu0 0.0
        %535 = vmatpush2.msra.mxu0 0.0
        %536 = vmatprep.subr.mxu0 0.0
        %537 = vmatpush2.msra.mxu0 0.0
        %538 = vmatprep.subr.mxu0 0.0
        %539 = vmatpush2.msra.mxu0 0.0
        %540 = vmatprep.subr.mxu0 0.0
        %541 = vmatpush2.msra.mxu0 0.0
        %542 = vmatprep.subr.mxu0 0.0
        %543 = vmatpush2.msra.mxu0 0.0
        %544 = vmatprep.subr.mxu0 0.0
        %545 = vmatpush2.msra.mxu0 0.0
        %546 = vmatprep.mubr.f32.mxu0 0.0
        %547 = vmatmul.mubr.f32.gmra.mxu0 %v478
        %v548 = vpop.f32.mrf.mxu0
        %v549 = vadd.f32 0.0, %v548
        %v550 = vpop.f32.mrf.mxu0
        %551 = vdwg.mxu0
        %v552 = vadd.f32 %v474, 0.0
        %v553 = vadd.f32 %v549, 0.0
        %v554 = vpack.c.bf16 %v552, %v552
        %v555 = vpack.c.bf16 %v553, %v553
        %v556 = vld [vmem:[%s2] sm:$0xf]
        %v557 = vld [vmem:[%s2 + $0x4] sm:$0xf]
        %v558 = vld [vmem:[%s2 + $0x8] sm:$0xf]
        %v559 = vld [vmem:[%s2 + $0xc] sm:$0xf]
        %v562 = vunpack.c.l.b16 %v554
        %v563 = vunpack.c.l.b16 %v555
        %v564 = vrot.slane %v563, 7
        %vm565 = vcmask 1041409
        %v566 = vsel %vm565, %v564, %v562
        %v567 = vpack.c.b16 %v566, %v566
        %v572 = vunpack.c.l.b16 %v556
        %v573 = vunpack.c.l.b16 %v557
        %v574 = vunpack.c.l.b16 %v558
        %v575 = vunpack.c.l.b16 %v559
        %v576 = vpack.c.b16 %v573, %v572
        %v577 = vpack.c.b16 %v575, %v574
        %v579 = vsel %vm226, %v567, 0
        %v582 = vsel %vm226, %v576, 0
        %v585 = vsel %vm226, %v577, 0
        %587 = vmatprep.subr.bf16.mxu0 0
        %588 = vmatpush1.bf16.xpose.msra.mxu0 0
        %589 = vmatprep.subr.bf16.mxu0 0
        %590 = vmatpush1.bf16.xpose.msra.mxu0 0
        %591 = vmatprep.subr.bf16.mxu0 0
        %592 = vmatpush1.bf16.xpose.msra.mxu0 0
        %593 = vmatprep.subr.bf16.mxu0 0
        %594 = vmatpush1.bf16.xpose.msra.mxu0 0
        %595 = vmatprep.subr.bf16.mxu0 0
        %596 = vmatpush1.bf16.xpose.msra.mxu0 0
        %597 = vmatprep.subr.bf16.mxu0 0
        %598 = vmatpush1.bf16.xpose.msra.mxu0 0
        %599 = vmatprep.subr.bf16.mxu0 0
        %600 = vmatpush1.bf16.xpose.msra.mxu0 %v585
        %601 = vmatprep.subr.bf16.mxu0 0
        %602 = vmatpush1.bf16.xpose.msra.mxu0 %v582
        %603 = vmatprep.subr.bf16.mxu0 0
        %604 = vmatpush2.bf16.xpose.msra.mxu0 0
        %605 = vmatprep.subr.bf16.mxu0 0
        %606 = vmatpush2.bf16.xpose.msra.mxu0 0
        %607 = vmatprep.subr.bf16.mxu0 0
        %608 = vmatpush2.bf16.xpose.msra.mxu0 0
        %609 = vmatprep.subr.bf16.mxu0 0
        %610 = vmatpush2.bf16.xpose.msra.mxu0 0
        %611 = vmatprep.subr.bf16.mxu0 0
        %612 = vmatpush2.bf16.xpose.msra.mxu0 0
        %613 = vmatprep.subr.bf16.mxu0 0
        %614 = vmatpush2.bf16.xpose.msra.mxu0 0
        %615 = vmatprep.subr.bf16.mxu0 0
        %616 = vmatpush2.bf16.xpose.msra.mxu0 0
        %617 = vmatprep.subr.bf16.mxu0 0
        %618 = vmatpush2.bf16.xpose.msra.mxu0 0
        %619 = vmatprep.mubr.bf16.mxu0 0
        %620 = vmatmul.mubr.bf16.gmra.mxu0 %v579
        %v621 = vpop.f32.mrf.mxu0
        %v622 = vadd.f32 0.0, %v621
        %v623 = vpop.f32.mrf.mxu0
        %v624 = vpop.f32.mrf.mxu0
        %v625 = vpop.f32.mrf.mxu0
        %626 = vdwg.mxu0
        %v627 = vadd.f32 %v200, %v622
        %v628 = vmax.f32 %v627, 0.0
        %v629 = vpack.c.bf16 %v628, %v628
        %v630 = vld [vmem:[%s196] sm:$0xf]
        %v631 = vld [vmem:[%s196 + $0x4] sm:$0xf]
        %v632 = vld [vmem:[%s196 + $0x8] sm:$0xf]
        %v633 = vld [vmem:[%s196 + $0xc] sm:$0xf]
        %v634 = vld [vmem:[%s196 + $0x10] sm:$0xf]
        %v635 = vld [vmem:[%s196 + $0x14] sm:$0xf]
        %v636 = vld [vmem:[%s196 + $0x18] sm:$0xf]
        %v637 = vld [vmem:[%s196 + $0x1c] sm:$0xf]
        %v638 = vld [vmem:[%s196 + $0x20] sm:$0xf]
        %v639 = vld [vmem:[%s196 + $0x24] sm:$0xf]
        %v640 = vld [vmem:[%s196 + $0x28] sm:$0xf]
        %v641 = vld [vmem:[%s196 + $0x2c] sm:$0xf]
        %v642 = vld [vmem:[%s196 + $0x30] sm:$0xf]
        %v643 = vld [vmem:[%s196 + $0x34] sm:$0xf]
        %v644 = vld [vmem:[%s196 + $0x38] sm:$0xf]
        %v645 = vld [vmem:[%s196 + $0x3c] sm:$0xf]
        %v646 = vld [vmem:[%s196 + $0x40] sm:$0xf]
        %v647 = vld [vmem:[%s196 + $0x44] sm:$0xf]
        %v648 = vld [vmem:[%s196 + $0x48] sm:$0xf]
        %v649 = vld [vmem:[%s196 + $0x4c] sm:$0xf]
        %v650 = vld [vmem:[%s196 + $0x50] sm:$0xf]
        %v651 = vld [vmem:[%s196 + $0x54] sm:$0xf]
        %v652 = vld [vmem:[%s196 + $0x58] sm:$0xf]
        %v653 = vld [vmem:[%s196 + $0x5c] sm:$0xf]
        %v654 = vld [vmem:[%s196 + $0x60] sm:$0xf]
        %v655 = vld [vmem:[%s196 + $0x64] sm:$0xf]
        %v656 = vld [vmem:[%s196 + $0x68] sm:$0xf]
        %v657 = vld [vmem:[%s196 + $0x6c] sm:$0xf]
        %v658 = vld [vmem:[%s196 + $0x70] sm:$0xf]
        %v659 = vld [vmem:[%s196 + $0x74] sm:$0xf]
        %v660 = vld [vmem:[%s196 + $0x78] sm:$0xf]
        %v661 = vld [vmem:[%s196 + $0x7c] sm:$0xf]
        %v694 = vunpack.c.l.b16 %v630
        %v695 = vunpack.c.l.b16 %v631
        %v696 = vunpack.c.l.b16 %v632
        %v697 = vunpack.c.l.b16 %v633
        %v698 = vunpack.c.l.b16 %v634
        %v699 = vunpack.c.l.b16 %v635
        %v700 = vunpack.c.l.b16 %v636
        %v701 = vunpack.c.l.b16 %v637
        %v702 = vunpack.c.l.b16 %v638
        %v703 = vunpack.c.l.b16 %v639
        %v704 = vunpack.c.l.b16 %v640
        %v705 = vunpack.c.l.b16 %v641
        %v706 = vunpack.c.l.b16 %v642
        %v707 = vunpack.c.l.b16 %v643
        %v708 = vunpack.c.l.b16 %v644
        %v709 = vunpack.c.l.b16 %v645
        %v710 = vunpack.c.l.b16 %v646
        %v711 = vunpack.c.l.b16 %v647
        %v712 = vunpack.c.l.b16 %v648
        %v713 = vunpack.c.l.b16 %v649
        %v714 = vunpack.c.l.b16 %v650
        %v715 = vunpack.c.l.b16 %v651
        %v716 = vunpack.c.l.b16 %v652
        %v717 = vunpack.c.l.b16 %v653
        %v718 = vunpack.c.l.b16 %v654
        %v719 = vunpack.c.l.b16 %v655
        %v720 = vunpack.c.l.b16 %v656
        %v721 = vunpack.c.l.b16 %v657
        %v722 = vunpack.c.l.b16 %v658
        %v723 = vunpack.c.l.b16 %v659
        %v724 = vunpack.c.l.b16 %v660
        %v725 = vunpack.c.l.b16 %v661
        %v726 = vpack.c.b16 %v695, %v694
        %v727 = vpack.c.b16 %v697, %v696
        %v728 = vpack.c.b16 %v699, %v698
        %v729 = vpack.c.b16 %v701, %v700
        %v730 = vpack.c.b16 %v703, %v702
        %v731 = vpack.c.b16 %v705, %v704
        %v732 = vpack.c.b16 %v707, %v706
        %v733 = vpack.c.b16 %v709, %v708
        %v734 = vpack.c.b16 %v711, %v710
        %v735 = vpack.c.b16 %v713, %v712
        %v736 = vpack.c.b16 %v715, %v714
        %v737 = vpack.c.b16 %v717, %v716
        %v738 = vpack.c.b16 %v719, %v718
        %v739 = vpack.c.b16 %v721, %v720
        %v740 = vpack.c.b16 %v723, %v722
        %v741 = vpack.c.b16 %v725, %v724
        %v743 = vsel %vm226, %v629, 0
        %v746 = vsel %vm226, %v726, 0
        %v749 = vsel %vm226, %v727, 0
        %v752 = vsel %vm226, %v728, 0
        %v755 = vsel %vm226, %v729, 0
        %v758 = vsel %vm226, %v730, 0
        %v761 = vsel %vm226, %v731, 0
        %v764 = vsel %vm226, %v732, 0
        %v767 = vsel %vm226, %v733, 0
        %v770 = vsel %vm226, %v734, 0
        %v773 = vsel %vm226, %v735, 0
        %v776 = vsel %vm226, %v736, 0
        %v779 = vsel %vm226, %v737, 0
        %v782 = vsel %vm226, %v738, 0
        %v785 = vsel %vm226, %v739, 0
        %v788 = vsel %vm226, %v740, 0
        %v791 = vsel %vm226, %v741, 0
        %793 = vmatprep.subr.bf16.mxu0 0
        %794 = vmatpush1.bf16.xpose.msra.mxu0 %v767
        %795 = vmatprep.subr.bf16.mxu0 0
        %796 = vmatpush1.bf16.xpose.msra.mxu0 %v764
        %797 = vmatprep.subr.bf16.mxu0 0
        %798 = vmatpush1.bf16.xpose.msra.mxu0 %v761
        %799 = vmatprep.subr.bf16.mxu0 0
        %800 = vmatpush1.bf16.xpose.msra.mxu0 %v758
        %801 = vmatprep.subr.bf16.mxu0 0
        %802 = vmatpush1.bf16.xpose.msra.mxu0 %v755
        %803 = vmatprep.subr.bf16.mxu0 0
        %804 = vmatpush1.bf16.xpose.msra.mxu0 %v752
        %805 = vmatprep.subr.bf16.mxu0 0
        %806 = vmatpush1.bf16.xpose.msra.mxu0 %v749
        %807 = vmatprep.subr.bf16.mxu0 0
        %808 = vmatpush1.bf16.xpose.msra.mxu0 %v746
        %809 = vmatprep.subr.bf16.mxu0 0
        %810 = vmatpush2.bf16.xpose.msra.mxu0 %v791
        %811 = vmatprep.subr.bf16.mxu0 0
        %812 = vmatpush2.bf16.xpose.msra.mxu0 %v788
        %813 = vmatprep.subr.bf16.mxu0 0
        %814 = vmatpush2.bf16.xpose.msra.mxu0 %v785
        %815 = vmatprep.subr.bf16.mxu0 0
        %816 = vmatpush2.bf16.xpose.msra.mxu0 %v782
        %817 = vmatprep.subr.bf16.mxu0 0
        %818 = vmatpush2.bf16.xpose.msra.mxu0 %v779
        %819 = vmatprep.subr.bf16.mxu0 0
        %820 = vmatpush2.bf16.xpose.msra.mxu0 %v776
        %821 = vmatprep.subr.bf16.mxu0 0
        %822 = vmatpush2.bf16.xpose.msra.mxu0 %v773
        %823 = vmatprep.subr.bf16.mxu0 0
        %824 = vmatpush2.bf16.xpose.msra.mxu0 %v770
        %825 = vmatprep.mubr.bf16.mxu0 0
        %826 = vmatmul.mubr.bf16.gmra.mxu0 %v743
        %v827 = vpop.f32.mrf.mxu0
        %v828 = vadd.f32 0.0, %v827
        %v829 = vpop.f32.mrf.mxu0
        %v830 = vadd.f32 0.0, %v829
        %v831 = vpop.f32.mrf.mxu0
        %v832 = vpop.f32.mrf.mxu0
        %833 = vdwg.mxu0
        %v836 = vcombine.low %v828, %v830
        %v838 = vunpack.c.l.s4 1983009808
        %v839 = vunpack.c.0.s8 %v838
        %v840 = vlaneseq
        %v841 = vshrl.u32 %v840, 7
        %v842 = vsub.s32 %v839, %v841
        %v843 = vrot.slane %v836, %v842
        %845 = vst [vmem:[%s191] sm:$0xf] %v843
        %s846 = sand.u32 %s115, 1
        %s847 = scalar_lea.sflag [#allocation3], %s846
        %s848 = sand.u32 %s115, 1
        %s849 = smul.addr %s848, 4
        %s850 = scalar_lea.vmem [#allocation2], %s849
        // Predicated region
        $region37: #{output_module_forward.1} parent=35 // pred_check
          %p851 = pneg %p125
        $region38: #{output_module_forward.1} parent=35 // pred_check_branch
          %853 = sbr.rel (%p851) target = $region40
        $region39: #{output_module_forward.1} parent=35 // pred_region
          %s854 = smul.u32 2, %s18
          %s856 = ssub.s32 64, 64
          %857 = vsyncadd %s847, %s856
          %s858 = smul.addr %s854, 32
          %s859 = scalar_lea.hbm %s4, %s858
          %s861 = sshll.u32 %s850, 4
          %s862 = int_to_ptr.vmem [resolvable:$true] %s861
          %864 = dma.vmem_to_hbm [thread:$0]  %s862, 64, %s859, %s847
        $region40: #{output_module_forward.1} parent=35 // pred_fallthru
          _
      $region36: #{output_module_forward.1} parent=5 // pred_fallthru
        _
      %p865 = scmp.le.s32.totalorder 2, %s13
      // Predicated region
      $region41: #{output_module_forward.1} parent=5 // pred_check
        %p866 = pneg %p865
      $region42: #{output_module_forward.1} parent=5 // pred_check_branch
        %868 = sbr.rel (%p866) target = $region44
      $region43: #{output_module_forward.1} parent=5 // pred_region
        %s869 = ssub.s32 %s13, 2
        // Predicated region
        $region45: #{output_module_forward.1} parent=43 // pred_check
          %p870 = pneg %p131
        $region46: #{output_module_forward.1} parent=43 // pred_check_branch
          %872 = sbr.rel (%p870) target = $region48
        $region47: #{output_module_forward.1} parent=43 // pred_region
          %s873 = sand.u32 %s116, 1
          %s874 = scalar_lea.sflag [#allocation3], %s873
          %s875 = sand.u32 %s116, 1
          %s876 = smul.addr %s875, 4
          %s877 = scalar_lea.vmem [#allocation2], %s876
          %878 = dma.done %s874, 64
        $region48: #{output_module_forward.1} parent=43 // pred_fallthru
          _
      $region44: #{output_module_forward.1} parent=5 // pred_fallthru
        _
    $region6: #{output_module_forward.1} parent=1 // loop_footer
      %s17 = sadd.s32 1, %s13
    $region7: #{output_module_forward.1} parent=1 // loop_footer_branch
      %12 = sbr.rel target = $region3
    $region8: #{output_module_forward.1} parent=1 // loop_exit
      _
    %879 = vsyncpa [#allocation3], 1
    %s880 = scalar_lea.sflag [#allocation3], 1
    %881 = vsyncpa %s880, 1

</llo_original>
